<compile_context>
chip_gen: v7x
topology: tpu7x:2x2x1
jax: 0.10.0
libtpu: 0.0.40
codegen_flags: <defaults>
</compile_context>

<pallas_src>
import jax
import jax.numpy as jnp
from jax.experimental import pallas as pl
from jax.experimental.pallas import tpu as pltpu

C_IN = 3
C_OUT = 128
KH = KW = 3
K_RAW = C_IN * KH * KW          # 27 real contraction rows
K_PAD = 32                      # padded contraction depth (27 + bias row + zeros)


def conv_im2col_kernel(p_ref, w_ref, o_ref):
    """One (batch, spatial-tile) block per grid step.

    p_ref: (1, K_PAD, HW_TILE)   im2col patches (bias ones-row included)
    w_ref: (C_OUT, K_PAD)        packed weights (bias column included)
    o_ref: (1, C_OUT, HW_TILE)   output block, lane-dense along H*W
    """
    acc = jnp.dot(w_ref[...], p_ref[0], preferred_element_type=jnp.float32)
    o_ref[0] = acc.astype(o_ref.dtype)


def _pick_hw_tile(hw, cap=2048):
    """Largest spatial tile <= cap that divides H*W and stays lane-aligned.

    Caps the f32 accumulator at (128, cap) and the double-buffered output block
    well under v7x's 64 MiB VMEM.  Falls back to the full extent (always a
    legal block shape) if no aligned divisor exists.
    """
    if hw <= cap:
        return hw
    t = (cap // 128) * 128
    while t >= 128:
        if hw % t == 0:
            return t
        t -= 128
    return hw


def conv2d_3x3_same(x_nchw, w_oihw, bias):
    """PyTorch-equivalent nn.Conv2d(3, 128, kernel_size=3, padding=1) forward."""
    N, Cin, H, W = x_nchw.shape
    assert Cin == C_IN
    HW = H * W
    dtype = x_nchw.dtype

    # ---- wrapper-side im2col on the small input (padding folded in) ---------
    x_pad = jnp.pad(x_nchw, ((0, 0), (0, 0), (1, 1), (1, 1)))
    slabs = []
    for kh in range(KH):
        for kw in range(KW):
            slabs.append(x_pad[:, :, kh:kh + H, kw:kw + W])       # (N, C_IN, H, W)
    # K ordering = (ci, kh, kw) to match OIHW weight flattening.
    patches = jnp.stack(slabs, axis=2).reshape(N, K_RAW, HW)
    ones_row = jnp.ones((N, 1, HW), dtype)                        # bias row
    zero_rows = jnp.zeros((N, K_PAD - K_RAW - 1, HW), dtype)
    patches = jnp.concatenate([patches, ones_row, zero_rows], axis=1)   # (N, 32, HW)

    # ---- weight/bias packing: (C_OUT, 32) with bias folded into column 27 ---
    w_flat = w_oihw.reshape(C_OUT, K_RAW).astype(dtype)
    w_packed = jnp.concatenate(
        [w_flat,
         bias.astype(dtype)[:, None],
         jnp.zeros((C_OUT, K_PAD - K_RAW - 1), dtype)], axis=1)         # (128, 32)

    hw_tile = _pick_hw_tile(HW)
    n_hw = HW // hw_tile

    out_flat = pl.pallas_call(
        conv_im2col_kernel,
        out_shape=jax.ShapeDtypeStruct((N, C_OUT, HW), dtype),
        grid_spec=pltpu.PrefetchScalarGridSpec(
            num_scalar_prefetch=0,
            grid=(N, n_hw),
            in_specs=[
                pl.BlockSpec((1, K_PAD, hw_tile), lambda n, s: (n, 0, s)),
                pl.BlockSpec((C_OUT, K_PAD), lambda n, s: (0, 0)),
            ],
            out_specs=pl.BlockSpec((1, C_OUT, hw_tile), lambda n, s: (n, 0, s)),
        ),
        compiler_params=pltpu.CompilerParams(
            dimension_semantics=("parallel", "parallel"),
            vmem_limit_bytes=32 * 1024 * 1024),
    )(patches, w_packed)

    # Output is already channel-major: a free reshape gives NCHW, no transpose.
    return out_flat.reshape(N, C_OUT, H, W)


if __name__ == "__main__":
    key = jax.random.PRNGKey(0)
    kx, kw_, kb = jax.random.split(key, 3)

    # Small shapes consistent with the module: batch=2, Cin=3, 16x16 spatial.
    N, H, W = 2, 16, 16
    x = jax.random.normal(kx, (N, C_IN, H, W), dtype=jnp.float32)

    # Deterministic synthetic parameters (shapes from nn.Conv2d(3, 128, 3, padding=1)).
    fan_in = C_IN * KH * KW
    bound = 1.0 / (fan_in ** 0.5)
    weight = jax.random.uniform(kw_, (C_OUT, C_IN, KH, KW),
                                minval=-bound, maxval=bound, dtype=jnp.float32)
    bias = jax.random.uniform(kb, (C_OUT,),
                              minval=-bound, maxval=bound, dtype=jnp.float32)

    out = jax.block_until_ready(conv2d_3x3_same(x, weight, bias))

    # Cross-check against XLA's native convolution (same semantics as PyTorch).
    ref = jax.lax.conv_general_dilated(
        x, weight, window_strides=(1, 1), padding=((1, 1), (1, 1)),
        dimension_numbers=("NCHW", "OIHW", "NCHW")) + bias.reshape(1, C_OUT, 1, 1)
    assert out.shape == (N, C_OUT, H, W)
    assert jnp.allclose(out, ref, atol=1e-4, rtol=1e-4)

    print("KERNEL_OK")
</pallas_src>

<mosaic_0001>
module attributes {stable_mosaic.version = 11 : i64} {
  func.func @conv_im2col_kernel(%arg0: i32, %arg1: i32, %arg2: memref<1x32x256xf32, #tpu.memory_space<vmem>>, %arg3: memref<128x32xf32, #tpu.memory_space<vmem>>, %arg4: memref<1x128x256xf32, #tpu.memory_space<vmem>>) attributes {dimension_semantics = [#tpu.dimension_semantics<parallel>, #tpu.dimension_semantics<parallel>], iteration_bounds = array<i64: 2, 1>, scalar_prefetch = 0 : i64, scratch_operands = 0 : i64, tpu.core_type = #tpu.core_type<tc>, window_params = [{transform_indices = @transform_0, window_bounds = array<i64: 1, 32, 256>}, {pipeline_mode = #tpu.pipeline_mode<synchronous>, transform_indices = @transform_1, window_bounds = array<i64: 128, 32>}, {transform_indices = @transform_2, window_bounds = array<i64: 1, 128, 256>}]} {
    %c0 = arith.constant 0 : index
    %c0_0 = arith.constant 0 : index
    %0 = vector.load %arg3[%c0, %c0_0] : memref<128x32xf32, #tpu.memory_space<vmem>>, vector<128x32xf32>
    %c0_1 = arith.constant 0 : index
    %c0_2 = arith.constant 0 : index
    %c0_3 = arith.constant 0 : index
    %1 = vector.load %arg2[%c0_1, %c0_2, %c0_3] : memref<1x32x256xf32, #tpu.memory_space<vmem>>, vector<1x32x256xf32>
    %2 = vector.shape_cast %1 : vector<1x32x256xf32> to vector<32x256xf32>
    %cst = arith.constant dense<0.000000e+00> : vector<128x256xf32>
    %3 = tpu.matmul %0, %2, %cst {dimension_numbers = #tpu.dot_dimension_numbers<[1], [0], [0], [1], [0, 0, 1, 1], [], []>} : vector<128x32xf32>, vector<32x256xf32>, vector<128x256xf32> -> vector<128x256xf32>
    %c0_4 = arith.constant 0 : index
    %c0_5 = arith.constant 0 : index
    %c0_6 = arith.constant 0 : index
    %4 = vector.load %arg4[%c0_4, %c0_5, %c0_6] : memref<1x128x256xf32, #tpu.memory_space<vmem>>, vector<1x128x256xf32>
    %5 = vector.shape_cast %4 : vector<1x128x256xf32> to vector<128x256xf32>
    %6 = vector.shape_cast %3 : vector<128x256xf32> to vector<1x128x256xf32>
    tpu.vector_store %arg4[%c0_4, %c0_5, %c0_6], %6 {strides = array<i32>} : memref<1x128x256xf32, #tpu.memory_space<vmem>>, vector<1x128x256xf32>,
    return
  }
  func.func @transform_0(%arg0: i32, %arg1: i32) -> (i32, i32, i32) {
    %c0_i32 = arith.constant 0 : i32
    %c0_i32_0 = arith.constant 0 : i32
    return %arg0, %c0_i32, %arg1 : i32, i32, i32
  }
  func.func @transform_1(%arg0: i32, %arg1: i32) -> (i32, i32) {
    %c0_i32 = arith.constant 0 : i32
    %c0_i32_0 = arith.constant 0 : i32
    %c0_i32_1 = arith.constant 0 : i32
    return %c0_i32, %c0_i32_0 : i32, i32
  }
  func.func @transform_2(%arg0: i32, %arg1: i32) -> (i32, i32, i32) {
    %c0_i32 = arith.constant 0 : i32
    %c0_i32_0 = arith.constant 0 : i32
    return %arg0, %c0_i32, %arg1 : i32, i32, i32
  }
}

</mosaic_0001>

<llo_original>
// kernel: tpu_custom_call.1
$region0: #{tpu_custom_call.1}
  #allocation0 [shape = 'u32[]', space=smem, size = 0x4, offset = 0x4, fixed_abs, tag = 'smem constant byte address 0x4 - core index']
  #allocation1 [shape = 'u32[144,128]{1,0:T(1,128)}', space=vmem, size = 0x12000, scoped, tag = 'internal scratch']
  %s0 = inlined_call_operand.vmem [shape: f32[2,32,256], index: 0, kind: input, shape index: {}]
  %s1 = inlined_call_operand.vmem [shape: f32[128,32], index: 1, kind: input, shape index: {}]
  %s2 = inlined_call_operand.hbm [shape: f32[2,128,256], index: 2, kind: output, shape index: {}]
  %s3 = sld [smem:[#allocation0]]
  $region41: #{tpu_custom_call.1} parent=0
    _
  %s5 = ssub.s32 1, %s3
  %s6 = scalar_select 0, %s5, %s3
  $region1: #{tpu_custom_call.1} parent=0
    #allocation2 [shape = 'u8[262144]{0}', space=vmem, size = 0x40000, scoped, tag = 'output window, operand 0']
    #allocation3 [shape = 's32[2]{0}', space=sflag, size = 0x8, scoped, tag = 'scoped memory for tpu_custom_call.1']
    %7 = vsyncpa [#allocation3], 0
    %s8 = scalar_lea.sflag [#allocation3], 1
    %9 = vsyncpa %s8, 0
    loop: start=0, step=1, limit=4
    $region2: #{tpu_custom_call.1} parent=1 // loop_pre_header
      _
    $region3: #{tpu_custom_call.1} parent=1 // loop_header
      %s11 = sphi 0, %s15
      %p12 = scmp.ge.s32.totalorder %s11, 4
      %s18 = sphi 0, %s30
      %s19 = sphi 0, %s26
      %s20 = sphi 0, %s18
      %s21 = sphi 0, %s19
      %s22 = sphi 0, %s20
      %s23 = sphi 0, %s21
      %s35 = sphi 0, %s37
      %s38 = sphi 0, %s35
      %s39 = sphi 0, %s38
      %s55 = sphi 0, %s39
      %s59 = sphi 0, %s59
      %s61 = sphi 0, %s59
      %s62 = sphi 0, %s61
      %s76 = sphi 0, %s62
      %s84 = sphi 0, %s86
      %s87 = sphi 0, %s84
      %s88 = sphi 0, %s87
      %s104 = sphi 0, %s88
    $region4: #{tpu_custom_call.1} parent=1 // loop_header_branch
      %14 = sbr.rel (%p12) target = $region8
    $region5: #{tpu_custom_call.1} parent=1 // loop_body
      %s16 = ssub.s32 %s11, 1
      %s17 = ssub.s32 %s11, 2
      %s24 = sadd.s32 1, %s19
      %p25 = scmp.ge.s32.totalorder %s24, 1
      %s26 = scalar_select %p25, 0, %s24
      %s27 = sadd.s32 1, %s18
      %s28 = scalar_select %p25, %s27, %s18
      %p29 = scmp.ge.s32.totalorder %s28, 2
      %s30 = scalar_select %p29, 0, %s28
      %s31 = ssub.s32 %s18, %s30
      %s32 = ssub.s32 %s19, %s26
      %s33 = sor.u32 %s31, %s32
      %p34 = scmp.eq.s32.totalorder %s33, 0
      %s36 = sadd.s32 %s35, 1
      %s37 = scalar_select %p34, %s35, %s36
      %p40 = pneg %p34
      %p41 = scmp.eq.s32.totalorder %s11, 1
      %p42 = por %p40, %p41
      %p43 = scmp.ne.s32.totalorder %s35, %s38
      %p44 = scmp.eq.s32.totalorder %s11, 0
      %p45 = por %p43, %p44
      %p46 = scmp.ne.s32.totalorder %s35, %s38
      %p47 = scmp.eq.s32.totalorder %s16, 1
      %p48 = por %p46, %p47
      %p49 = scmp.ne.s32.totalorder %s38, %s39
      %p50 = scmp.eq.s32.totalorder %s16, 0
      %p51 = por %p49, %p50
      %p52 = scmp.ne.s32.totalorder %s38, %s39
      %p53 = scmp.eq.s32.totalorder %s17, 1
      %p54 = por %p52, %p53
      %p56 = scmp.ne.s32.totalorder %s39, %s55
      %p57 = scmp.eq.s32.totalorder %s17, 0
      %p58 = por %p56, %p57
      %s60 = sadd.s32 %s59, 1
      %p63 = scmp.eq.s32.totalorder %s11, 1
      %p64 = scmp.ne.s32.totalorder %s59, %s61
      %p65 = scmp.eq.s32.totalorder %s11, 0
      %p66 = por %p64, %p65
      %p67 = scmp.ne.s32.totalorder %s59, %s61
      %p68 = scmp.eq.s32.totalorder %s16, 1
      %p69 = por %p67, %p68
      %p70 = scmp.ne.s32.totalorder %s61, %s62
      %p71 = scmp.eq.s32.totalorder %s16, 0
      %p72 = por %p70, %p71
      %p73 = scmp.ne.s32.totalorder %s61, %s62
      %p74 = scmp.eq.s32.totalorder %s17, 1
      %p75 = por %p73, %p74
      %p77 = scmp.ne.s32.totalorder %s62, %s76
      %p78 = scmp.eq.s32.totalorder %s17, 0
      %p79 = por %p77, %p78
      %s80 = ssub.s32 %s18, %s30
      %s81 = ssub.s32 %s19, %s26
      %s82 = sor.u32 %s80, %s81
      %p83 = scmp.eq.s32.totalorder %s82, 0
      %s85 = sadd.s32 %s84, 1
      %s86 = scalar_select %p83, %s84, %s85
      %p89 = pneg %p83
      %p90 = scmp.eq.s32.totalorder %s11, 1
      %p91 = por %p89, %p90
      %p92 = scmp.ne.s32.totalorder %s84, %s87
      %p93 = scmp.eq.s32.totalorder %s11, 0
      %p94 = por %p92, %p93
      %p95 = scmp.ne.s32.totalorder %s84, %s87
      %p96 = scmp.eq.s32.totalorder %s16, 1
      %p97 = por %p95, %p96
      %p98 = scmp.ne.s32.totalorder %s87, %s88
      %p99 = scmp.eq.s32.totalorder %s16, 0
      %p100 = por %p98, %p99
      %p101 = scmp.ne.s32.totalorder %s87, %s88
      %p102 = scmp.eq.s32.totalorder %s17, 1
      %p103 = por %p101, %p102
      %p105 = scmp.ne.s32.totalorder %s88, %s104
      %p106 = scmp.eq.s32.totalorder %s17, 0
      %p107 = por %p105, %p106
      %p108 = scmp.le.s32.totalorder 1, %s11
      %p109 = scmp.lt.s32.totalorder %s11, 3
      %p110 = pnand %p108, %p109
      %p111 = pneg %p110
      // Predicated region
      $region9: #{tpu_custom_call.1} parent=5 // pred_check
        _
      $region10: #{tpu_custom_call.1} parent=5 // pred_check_branch
        %113 = sbr.rel (%p110) target = $region12
      $region11: #{tpu_custom_call.1} parent=5 // pred_region
        %s114 = ssub.s32 %s11, 1
        // Predicated region
        $region13: #{tpu_custom_call.1} parent=11 // pred_check
          %p115 = pneg %p72
        $region14: #{tpu_custom_call.1} parent=11 // pred_check_branch
          %117 = sbr.rel (%p115) target = $region16
        $region15: #{tpu_custom_call.1} parent=11 // pred_region
          _
        $region16: #{tpu_custom_call.1} parent=11 // pred_fallthru
          _
      $region12: #{tpu_custom_call.1} parent=5 // pred_fallthru
        _
      %p118 = scmp.lt.s32.totalorder %s11, 2
      // Predicated region
      $region17: #{tpu_custom_call.1} parent=5 // pred_check
        %p119 = pneg %p118
      $region18: #{tpu_custom_call.1} parent=5 // pred_check_branch
        %121 = sbr.rel (%p119) target = $region20
      $region19: #{tpu_custom_call.1} parent=5 // pred_region
        // Predicated region
        $region21: #{tpu_custom_call.1} parent=19 // pred_check
          %p122 = pneg %p45
        $region22: #{tpu_custom_call.1} parent=19 // pred_check_branch
          %124 = sbr.rel (%p122) target = $region24
        $region23: #{tpu_custom_call.1} parent=19 // pred_region
          %s125 = smul.u32 2, %s19
          %p126 = scmp.lt.s32.totalorder %s18, 1
          %s127 = scalar_select %p126, %s18, 1
          %p128 = scmp.lt.s32.totalorder %s125, 1
          %s129 = scalar_select %p128, %s125, 1
          %s130 = smul.addr %s127, 8
          %s131 = sadd.s32 %s129, %s130
          %s132 = smul.addr %s131, 8
          %s133 = scalar_lea.vmem %s0, %s132
          %s134 = smul.u32 2, %s19
        $region24: #{tpu_custom_call.1} parent=19 // pred_fallthru
          _
      $region20: #{tpu_custom_call.1} parent=5 // pred_fallthru
        _
      %p135 = scmp.le.s32.totalorder 1, %s11
      %p136 = scmp.lt.s32.totalorder %s11, 3
      %p137 = pnand %p135, %p136
      %p138 = pneg %p137
      // Predicated region
      $region25: #{tpu_custom_call.1} parent=5 // pred_check
        _
      $region26: #{tpu_custom_call.1} parent=5 // pred_check_branch
        %140 = sbr.rel (%p137) target = $region28
      $region27: #{tpu_custom_call.1} parent=5 // pred_region
        %s141 = ssub.s32 %s11, 1
        %s142 = smul.u32 2, %s21
        %p143 = scmp.lt.s32.totalorder %s20, 1
        %s144 = scalar_select %p143, %s20, 1
        %p145 = scmp.lt.s32.totalorder %s142, 1
        %s146 = scalar_select %p145, %s142, 1
        %s147 = smul.addr %s144, 8
        %s148 = sadd.s32 %s146, %s147
        %s149 = smul.addr %s148, 8
        %s150 = scalar_lea.vmem %s0, %s149
        %p151 = pneg %p51
        %p152 = pneg %p48
        %p153 = pneg %p72
        %p154 = pneg %p69
        %p155 = pneg %p100
        %p156 = pneg %p97
        %s157 = sand.u32 %s87, 1
        %s158 = scalar_lea.sflag [#allocation3], %s157
        %s159 = sand.u32 %s87, 1
        %s160 = smul.addr %s159, 256
        %s161 = scalar_lea.vmem [#allocation2], %s160
        %s162 = smul.u32 2, %s21
        %p163 = scmp.lt.s32.totalorder %s20, 1
        %s164 = scalar_select %p163, %s20, 1
        %p165 = scmp.lt.s32.totalorder %s162, 1
        %s166 = scalar_select %p165, %s162, 1
        %s167 = smul.addr %s164, 8
        %s168 = sadd.s32 %s166, %s167
        %s169 = smul.addr %s168, 8
        %s170 = scalar_lea.vmem %s0, %s169
        %s171 = smul.u32 2, %s21
        %s172 = smul.u32 2, %s21
        %v173 = vld [vmem:[%s1] sm:$0xff]
        %v174 = vld [vmem:[%s1 + $0x8] sm:$0xff]
        %v175 = vld [vmem:[%s1 + $0x10] sm:$0xff]
        %v176 = vld [vmem:[%s1 + $0x18] sm:$0xff]
        %v177 = vld [vmem:[%s1 + $0x20] sm:$0xff]
        %v178 = vld [vmem:[%s1 + $0x28] sm:$0xff]
        %v179 = vld [vmem:[%s1 + $0x30] sm:$0xff]
        %v180 = vld [vmem:[%s1 + $0x38] sm:$0xff]
        %v181 = vld [vmem:[%s1 + $0x40] sm:$0xff]
        %v182 = vld [vmem:[%s1 + $0x48] sm:$0xff]
        %v183 = vld [vmem:[%s1 + $0x50] sm:$0xff]
        %v184 = vld [vmem:[%s1 + $0x58] sm:$0xff]
        %v185 = vld [vmem:[%s1 + $0x60] sm:$0xff]
        %v186 = vld [vmem:[%s1 + $0x68] sm:$0xff]
        %v187 = vld [vmem:[%s1 + $0x70] sm:$0xff]
        %v188 = vld [vmem:[%s1 + $0x78] sm:$0xff]
        %v189 = vld [vmem:[%s170] sm:$0xff]
        %v190 = vld [vmem:[%s170 + $0x8] sm:$0xff]
        %v191 = vld [vmem:[%s170 + $0x10] sm:$0xff]
        %v192 = vld [vmem:[%s170 + $0x18] sm:$0xff]
        %v193 = vld [vmem:[%s170 + $0x20] sm:$0xff]
        %v194 = vld [vmem:[%s170 + $0x28] sm:$0xff]
        %v195 = vld [vmem:[%s170 + $0x30] sm:$0xff]
        %v196 = vld [vmem:[%s170 + $0x38] sm:$0xff]
        %vm197 = vcmask 261120
        %v199 = vsel %vm197, %v173, 0
        %v202 = vsel %vm197, %v174, 0
        %v205 = vsel %vm197, %v175, 0
        %v208 = vsel %vm197, %v176, 0
        %v211 = vsel %vm197, %v177, 0
        %v214 = vsel %vm197, %v178, 0
        %v217 = vsel %vm197, %v179, 0
        %v220 = vsel %vm197, %v180, 0
        %v223 = vsel %vm197, %v181, 0
        %v226 = vsel %vm197, %v182, 0
        %v229 = vsel %vm197, %v183, 0
        %v232 = vsel %vm197, %v184, 0
        %v235 = vsel %vm197, %v185, 0
        %v238 = vsel %vm197, %v186, 0
        %v241 = vsel %vm197, %v187, 0
        %v244 = vsel %vm197, %v188, 0
        %246 = vmatprep.subr.mxu0 %v190
        %247 = vmatpush1.msra.mxu0 %v189
        %248 = vmatprep.subr.mxu0 %v192
        %249 = vmatpush1.msra.mxu0 %v191
        %250 = vmatprep.subr.mxu0 %v194
        %251 = vmatpush1.msra.mxu0 %v193
        %252 = vmatprep.subr.mxu0 %v196
        %253 = vmatpush1.msra.mxu0 %v195
        %254 = vmatprep.subr.mxu0 0.0
        %255 = vmatpush1.msra.mxu0 0.0
        %256 = vmatprep.subr.mxu0 0.0
        %257 = vmatpush1.msra.mxu0 0.0
        %258 = vmatprep.subr.mxu0 0.0
        %259 = vmatpush1.msra.mxu0 0.0
        %260 = vmatprep.subr.mxu0 0.0
        %261 = vmatpush1.msra.mxu0 0.0
        %262 = vmatprep.subr.mxu0 0.0
        %263 = vmatpush1.msra.mxu0 0.0
        %264 = vmatprep.subr.mxu0 0.0
        %265 = vmatpush1.msra.mxu0 0.0
        %266 = vmatprep.subr.mxu0 0.0
        %267 = vmatpush1.msra.mxu0 0.0
        %268 = vmatprep.subr.mxu0 0.0
        %269 = vmatpush1.msra.mxu0 0.0
        %270 = vmatprep.subr.mxu0 0.0
        %271 = vmatpush1.msra.mxu0 0.0
        %272 = vmatprep.subr.mxu0 0.0
        %273 = vmatpush1.msra.mxu0 0.0
        %274 = vmatprep.subr.mxu0 0.0
        %275 = vmatpush1.msra.mxu0 0.0
        %276 = vmatprep.subr.mxu0 0.0
        %277 = vmatpush1.msra.mxu0 0.0
        %278 = vmatprep.subr.mxu0 0.0
        %279 = vmatpush1.msra.mxu0 0.0
        %280 = vmatprep.subr.mxu0 0.0
        %281 = vmatpush1.msra.mxu0 0.0
        %282 = vmatprep.subr.mxu0 0.0
        %283 = vmatpush1.msra.mxu0 0.0
        %284 = vmatprep.subr.mxu0 0.0
        %285 = vmatpush1.msra.mxu0 0.0
        %286 = vmatprep.subr.mxu0 0.0
        %287 = vmatpush1.msra.mxu0 0.0
        %288 = vmatprep.subr.mxu0 0.0
        %289 = vmatpush1.msra.mxu0 0.0
        %290 = vmatprep.subr.mxu0 0.0
        %291 = vmatpush1.msra.mxu0 0.0
        %292 = vmatprep.subr.mxu0 0.0
        %293 = vmatpush1.msra.mxu0 0.0
        %294 = vmatprep.subr.mxu0 0.0
        %295 = vmatpush1.msra.mxu0 0.0
        %296 = vmatprep.subr.mxu0 0.0
        %297 = vmatpush1.msra.mxu0 0.0
        %298 = vmatprep.subr.mxu0 0.0
        %299 = vmatpush1.msra.mxu0 0.0
        %300 = vmatprep.subr.mxu0 0.0
        %301 = vmatpush1.msra.mxu0 0.0
        %302 = vmatprep.subr.mxu0 0.0
        %303 = vmatpush1.msra.mxu0 0.0
        %304 = vmatprep.subr.mxu0 0.0
        %305 = vmatpush1.msra.mxu0 0.0
        %306 = vmatprep.subr.mxu0 0.0
        %307 = vmatpush1.msra.mxu0 0.0
        %308 = vmatprep.subr.mxu0 0.0
        %309 = vmatpush1.msra.mxu0 0.0
        %310 = vmatprep.mubr.f32.mxu0 0.0
        %311 = vmatmul.mubr.f32.gmra.mrb[0].mxu0 %v199
        %v312 = vpop.f32.mrb[0].mxu0
        %v313 = vadd.f32 0.0, %v312
        %v314 = vpop.f32.mrb[0].mxu0
        %v315 = vadd.f32 0.0, %v314
        %316 = vmatprep.mubr.f32.mxu0 0.0
        %317 = vmatmul.mubr.f32.gmra.mrb[0].mxu0 %v202
        %v318 = vpop.f32.mrb[0].mxu0
        %v319 = vadd.f32 0.0, %v318
        %v320 = vpop.f32.mrb[0].mxu0
        %v321 = vadd.f32 0.0, %v320
        %322 = vmatprep.mubr.f32.mxu0 0.0
        %323 = vmatmul.mubr.f32.gmra.mrb[0].mxu0 %v205
        %v324 = vpop.f32.mrb[0].mxu0
        %v325 = vadd.f32 0.0, %v324
        %v326 = vpop.f32.mrb[0].mxu0
        %v327 = vadd.f32 0.0, %v326
        %328 = vmatprep.mubr.f32.mxu0 0.0
        %329 = vmatmul.mubr.f32.gmra.mrb[0].mxu0 %v208
        %v330 = vpop.f32.mrb[0].mxu0
        %v331 = vadd.f32 0.0, %v330
        %v332 = vpop.f32.mrb[0].mxu0
        %v333 = vadd.f32 0.0, %v332
        %334 = vmatprep.mubr.f32.mxu0 0.0
        %335 = vmatmul.mubr.f32.gmra.mrb[0].mxu0 %v211
        %v336 = vpop.f32.mrb[0].mxu0
        %v337 = vadd.f32 0.0, %v336
        %v338 = vpop.f32.mrb[0].mxu0
        %v339 = vadd.f32 0.0, %v338
        %340 = vmatprep.mubr.f32.mxu0 0.0
        %341 = vmatmul.mubr.f32.gmra.mrb[0].mxu0 %v214
        %v342 = vpop.f32.mrb[0].mxu0
        %v343 = vadd.f32 0.0, %v342
        %v344 = vpop.f32.mrb[0].mxu0
        %v345 = vadd.f32 0.0, %v344
        %346 = vmatprep.mubr.f32.mxu0 0.0
        %347 = vmatmul.mubr.f32.gmra.mrb[0].mxu0 %v217
        %v348 = vpop.f32.mrb[0].mxu0
        %v349 = vadd.f32 0.0, %v348
        %v350 = vpop.f32.mrb[0].mxu0
        %v351 = vadd.f32 0.0, %v350
        %352 = vmatprep.mubr.f32.mxu0 0.0
        %353 = vmatmul.mubr.f32.gmra.mrb[0].mxu0 %v220
        %v354 = vpop.f32.mrb[0].mxu0
        %v355 = vadd.f32 0.0, %v354
        %v356 = vpop.f32.mrb[0].mxu0
        %v357 = vadd.f32 0.0, %v356
        %358 = vmatprep.mubr.f32.mxu0 0.0
        %359 = vmatmul.mubr.f32.gmra.mrb[0].mxu0 %v223
        %v360 = vpop.f32.mrb[0].mxu0
        %v361 = vadd.f32 0.0, %v360
        %v362 = vpop.f32.mrb[0].mxu0
        %v363 = vadd.f32 0.0, %v362
        %364 = vmatprep.mubr.f32.mxu0 0.0
        %365 = vmatmul.mubr.f32.gmra.mrb[0].mxu0 %v226
        %v366 = vpop.f32.mrb[0].mxu0
        %v367 = vadd.f32 0.0, %v366
        %v368 = vpop.f32.mrb[0].mxu0
        %v369 = vadd.f32 0.0, %v368
        %370 = vmatprep.mubr.f32.mxu0 0.0
        %371 = vmatmul.mubr.f32.gmra.mrb[0].mxu0 %v229
        %v372 = vpop.f32.mrb[0].mxu0
        %v373 = vadd.f32 0.0, %v372
        %v374 = vpop.f32.mrb[0].mxu0
        %v375 = vadd.f32 0.0, %v374
        %376 = vmatprep.mubr.f32.mxu0 0.0
        %377 = vmatmul.mubr.f32.gmra.mrb[0].mxu0 %v232
        %v378 = vpop.f32.mrb[0].mxu0
        %v379 = vadd.f32 0.0, %v378
        %v380 = vpop.f32.mrb[0].mxu0
        %v381 = vadd.f32 0.0, %v380
        %382 = vmatprep.mubr.f32.mxu0 0.0
        %383 = vmatmul.mubr.f32.gmra.mrb[0].mxu0 %v235
        %v384 = vpop.f32.mrb[0].mxu0
        %v385 = vadd.f32 0.0, %v384
        %v386 = vpop.f32.mrb[0].mxu0
        %v387 = vadd.f32 0.0, %v386
        %388 = vmatprep.mubr.f32.mxu0 0.0
        %389 = vmatmul.mubr.f32.gmra.mrb[0].mxu0 %v238
        %v390 = vpop.f32.mrb[0].mxu0
        %v391 = vadd.f32 0.0, %v390
        %v392 = vpop.f32.mrb[0].mxu0
        %v393 = vadd.f32 0.0, %v392
        %394 = vmatprep.mubr.f32.mxu0 0.0
        %395 = vmatmul.mubr.f32.gmra.mrb[0].mxu0 %v241
        %v396 = vpop.f32.mrb[0].mxu0
        %v397 = vadd.f32 0.0, %v396
        %v398 = vpop.f32.mrb[0].mxu0
        %v399 = vadd.f32 0.0, %v398
        %400 = vmatprep.mubr.f32.mxu0 0.0
        %401 = vmatmul.mubr.f32.gmra.mrb[0].mxu0 %v244
        %v402 = vpop.f32.mrb[0].mxu0
        %v403 = vadd.f32 0.0, %v402
        %v404 = vpop.f32.mrb[0].mxu0
        %v405 = vadd.f32 0.0, %v404
        %406 = vdwg.mxu0
        %407 = vst [vmem:[%s161] sm:$0xff] %v313
        %408 = vst [vmem:[%s161 + $0x8] sm:$0xff] %v315
        %409 = vst [vmem:[%s161 + $0x10] sm:$0xff] %v319
        %410 = vst [vmem:[%s161 + $0x18] sm:$0xff] %v321
        %411 = vst [vmem:[%s161 + $0x20] sm:$0xff] %v325
        %412 = vst [vmem:[%s161 + $0x28] sm:$0xff] %v327
        %413 = vst [vmem:[%s161 + $0x30] sm:$0xff] %v331
        %414 = vst [vmem:[%s161 + $0x38] sm:$0xff] %v333
        %415 = vst [vmem:[%s161 + $0x40] sm:$0xff] %v337
        %416 = vst [vmem:[%s161 + $0x48] sm:$0xff] %v339
        %417 = vst [vmem:[%s161 + $0x50] sm:$0xff] %v343
        %418 = vst [vmem:[%s161 + $0x58] sm:$0xff] %v345
        %419 = vst [vmem:[%s161 + $0x60] sm:$0xff] %v349
        %420 = vst [vmem:[%s161 + $0x68] sm:$0xff] %v351
        %421 = vst [vmem:[%s161 + $0x70] sm:$0xff] %v355
        %422 = vst [vmem:[%s161 + $0x78] sm:$0xff] %v357
        %423 = vst [vmem:[%s161 + $0x80] sm:$0xff] %v361
        %424 = vst [vmem:[%s161 + $0x88] sm:$0xff] %v363
        %425 = vst [vmem:[%s161 + $0x90] sm:$0xff] %v367
        %426 = vst [vmem:[%s161 + $0x98] sm:$0xff] %v369
        %427 = vst [vmem:[%s161 + $0xa0] sm:$0xff] %v373
        %428 = vst [vmem:[%s161 + $0xa8] sm:$0xff] %v375
        %429 = vst [vmem:[%s161 + $0xb0] sm:$0xff] %v379
        %430 = vst [vmem:[%s161 + $0xb8] sm:$0xff] %v381
        %431 = vst [vmem:[%s161 + $0xc0] sm:$0xff] %v385
        %432 = vst [vmem:[%s161 + $0xc8] sm:$0xff] %v387
        %433 = vst [vmem:[%s161 + $0xd0] sm:$0xff] %v391
        %434 = vst [vmem:[%s161 + $0xd8] sm:$0xff] %v393
        %435 = vst [vmem:[%s161 + $0xe0] sm:$0xff] %v397
        %436 = vst [vmem:[%s161 + $0xe8] sm:$0xff] %v399
        %437 = vst [vmem:[%s161 + $0xf0] sm:$0xff] %v403
        %438 = vst [vmem:[%s161 + $0xf8] sm:$0xff] %v405
        %s439 = sand.u32 %s87, 1
        %s440 = scalar_lea.sflag [#allocation3], %s439
        %s441 = sand.u32 %s87, 1
        %s442 = smul.addr %s441, 256
        %s443 = scalar_lea.vmem [#allocation2], %s442
        // Predicated region
        $region29: #{tpu_custom_call.1} parent=27 // pred_check
          %p444 = pneg %p97
        $region30: #{tpu_custom_call.1} parent=27 // pred_check_branch
          %446 = sbr.rel (%p444) target = $region32
        $region31: #{tpu_custom_call.1} parent=27 // pred_region
          %s447 = smul.u32 2, %s21
          %s449 = ssub.s32 4096, 4096
          %450 = vsyncadd %s440, %s449
          %s451 = smul.addr %s20, 32
          %s452 = sadd.s32 %s447, %s451
          %s453 = smul.addr %s452, 128
          %s454 = scalar_lea.hbm %s2, %s453
          %s455 = sshll.u32 %s443, 4
          %s456 = int_to_ptr.vmem [resolvable:$true] %s455
          %461 = dma.vmem_to_hbm [thread:$0]  %s456, 4096, %s454, %s440, 256, 256, 16
        $region32: #{tpu_custom_call.1} parent=27 // pred_fallthru
          _
      $region28: #{tpu_custom_call.1} parent=5 // pred_fallthru
        _
      %p462 = scmp.le.s32.totalorder 2, %s11
      // Predicated region
      $region33: #{tpu_custom_call.1} parent=5 // pred_check
        %p463 = pneg %p462
      $region34: #{tpu_custom_call.1} parent=5 // pred_check_branch
        %465 = sbr.rel (%p463) target = $region36
      $region35: #{tpu_custom_call.1} parent=5 // pred_region
        %s466 = ssub.s32 %s11, 2
        // Predicated region
        $region37: #{tpu_custom_call.1} parent=35 // pred_check
          %p467 = pneg %p103
        $region38: #{tpu_custom_call.1} parent=35 // pred_check_branch
          %469 = sbr.rel (%p467) target = $region40
        $region39: #{tpu_custom_call.1} parent=35 // pred_region
          %s470 = sand.u32 %s88, 1
          %s471 = scalar_lea.sflag [#allocation3], %s470
          %s472 = sand.u32 %s88, 1
          %s473 = smul.addr %s472, 256
          %s474 = scalar_lea.vmem [#allocation2], %s473
          %475 = dma.done %s471, 4096
        $region40: #{tpu_custom_call.1} parent=35 // pred_fallthru
          _
      $region36: #{tpu_custom_call.1} parent=5 // pred_fallthru
        _
    $region6: #{tpu_custom_call.1} parent=1 // loop_footer
      %s15 = sadd.s32 1, %s11
    $region7: #{tpu_custom_call.1} parent=1 // loop_footer_branch
      %10 = sbr.rel target = $region3
    $region8: #{tpu_custom_call.1} parent=1 // loop_exit
      _
    %476 = vsyncpa [#allocation3], 1
    %s477 = scalar_lea.sflag [#allocation3], 1
    %478 = vsyncpa %s477, 1

</llo_original>
